<compile_context>
chip_gen: v6e
topology: v6e:2x2x1
jax: 0.10.0
libtpu: 0.0.40
codegen_flags: <defaults>
</compile_context>

<pallas_src>
import functools
import math

import jax
import jax.numpy as jnp
import numpy as np
from jax.experimental import pallas as pl
from jax.experimental.pallas import tpu as pltpu


def _dropout_kernel(seed_ref, x_ref, o_ref, *, block_rows, cols, thr, scale):
    """One (TB, C) tile: counter-based hash -> keep mask -> inverted dropout."""
    shp = x_ref.shape

    # Global flat element index (mod 2**32) — independent of the tiling, so the
    # realized mask only depends on (seed, element position).
    row0 = (pl.program_id(0) * block_rows).astype(jnp.uint32)
    row_ids = jax.lax.broadcasted_iota(jnp.int32, shp, 0).astype(jnp.uint32) + row0
    col_ids = jax.lax.broadcasted_iota(jnp.int32, shp, 1).astype(jnp.uint32)
    idx = row_ids * jnp.uint32(cols) + col_ids

    # Mix the user seed in (scalar work), then an avalanche finalizer
    # (hash-prospector constants) to decorrelate adjacent indices/seeds.
    seed = seed_ref[0].astype(jnp.uint32)
    h = idx ^ (seed * jnp.uint32(0x9E3779B9))
    h = (h ^ (h >> 16)) * jnp.uint32(0x7FEB352D)
    h = (h ^ (h >> 15)) * jnp.uint32(0x846CA68B)
    h = h ^ (h >> 16)

    # Integer-threshold keep decision; scale/select in the input dtype.
    keep = h < jnp.uint32(thr)
    x = x_ref[...]
    scale_c = jnp.asarray(scale, dtype=x.dtype)
    o_ref[...] = jnp.where(keep, x * scale_c, jnp.zeros_like(x))


def _choose_layout(n):
    """Pick lane-dense columns C and padded length for the flat tensor."""
    for cand in (512, 256, 128):
        if n % cand == 0:
            return n, cand
    # Not a multiple of 128: pad to a multiple of 1024 (8 x 128) so all loads
    # and stores stay full-lane; the padding is sliced off after the kernel.
    n_pad = ((n + 1023) // 1024) * 1024
    return n_pad, 512


def _choose_block_rows(r, c):
    """Rows per block: ~1M elements per block, >= 2 blocks when enough work."""
    target_elems = 1 << 20                       # ~4 MiB f32 / 2 MiB bf16 per block
    rows = max(8, ((target_elems // c) // 8) * 8)
    tb = min(r, rows)
    if tb >= r:
        if r >= 16:
            # Split so the "parallel" grid axis gives both v7x TCs work.
            tb = max(8, ((r // 2) // 8) * 8)
        else:
            tb = r                               # tiny tensor: single full block
    return tb


@functools.partial(jax.jit, static_argnames=("p", "training"))
def dropout_for_mc(x, seed, *, p: float = 0.5, training: bool = True):
    """JAX/Pallas equivalent of torch.nn.functional.dropout(x, p, training)."""
    if (not training) or p <= 0.0:
        return x                                 # identity fast path (no kernel)
    if p >= 1.0:
        return jnp.zeros_like(x)                 # torch: everything dropped

    orig_shape = x.shape
    n = math.prod(orig_shape)
    itemsize = np.dtype(x.dtype).itemsize

    n_pad, c = _choose_layout(n)
    xf = x.reshape(-1)
    if n_pad != n:
        xf = jnp.pad(xf, (0, n_pad - n))
    r = n_pad // c
    tb = _choose_block_rows(r, c)
    x2 = xf.reshape(r, c)

    keep = 1.0 - float(p)
    thr = min(int(round(keep * (1 << 32))), (1 << 32) - 1)
    scale = 1.0 / keep

    seed_arr = jnp.reshape(jnp.asarray(seed, dtype=jnp.int32), (1,))

    grid = (pl.cdiv(r, tb),)
    grid_spec = pltpu.PrefetchScalarGridSpec(
        num_scalar_prefetch=1,                   # seed lands in SMEM
        grid=grid,
        in_specs=[pl.BlockSpec((tb, c), lambda i, s: (i, 0))],
        out_specs=pl.BlockSpec((tb, c), lambda i, s: (i, 0)),
    )

    cost = pl.CostEstimate(
        flops=16 * n_pad,                        # hash + compare + scale + select
        transcendentals=0,
        bytes_accessed=2 * n_pad * itemsize,     # read x + write y
    )

    out2 = pl.pallas_call(
        functools.partial(_dropout_kernel, block_rows=tb, cols=c, thr=thr,
                          scale=scale),
        out_shape=jax.ShapeDtypeStruct((r, c), x.dtype),
        grid_spec=grid_spec,
        compiler_params=pltpu.CompilerParams(
            dimension_semantics=("parallel",),   # megacore: rows split across TCs
            vmem_limit_bytes=48 * 1024 * 1024,   # fits v5e/v6e/v7x physical VMEM
        ),
        cost_estimate=cost,
    )(seed_arr, x2)

    out = out2.reshape(-1)
    if n_pad != n:
        out = out[:n]
    return out.reshape(orig_shape)


class DropoutForMC:
    """Mirror of the PyTorch module: dropout is applied whenever self.flag is True."""

    def __init__(self, p, dropout_flag=True):
        self.p = float(p)
        self.flag = bool(dropout_flag)

    def __call__(self, x, seed):
        return dropout_for_mc(x, seed, p=self.p, training=self.flag)


if __name__ == "__main__":
    key = jax.random.PRNGKey(0)
    kx, ks = jax.random.split(key)

    batch, seq, hidden = 2, 8, 32
    x = jax.random.normal(kx, (batch, seq, hidden), jnp.float32)
    seed = jax.random.randint(ks, (), 0, 2**31 - 1, dtype=jnp.int32)

    # Train-style / MC path: dropout active even in "eval".
    layer = DropoutForMC(p=0.5, dropout_flag=True)
    y = layer(x, seed)
    jax.block_until_ready(y)

    assert y.shape == x.shape and y.dtype == x.dtype
    xn, yn = np.asarray(x), np.asarray(y)
    kept = yn != 0.0
    # Surviving elements must be exactly x / (1 - p) = 2 * x.
    np.testing.assert_allclose(yn[kept], xn[kept] * 2.0, rtol=1e-6, atol=1e-6)
    drop_frac = 1.0 - kept.mean()
    assert 0.2 < drop_frac < 0.8, f"unexpected drop fraction {drop_frac}"

    # Flag off -> identity (matches F.dropout(..., training=False)).
    layer_off = DropoutForMC(p=0.5, dropout_flag=False)
    y_off = layer_off(x, seed)
    jax.block_until_ready(y_off)
    np.testing.assert_allclose(np.asarray(y_off), xn)

    print("KERNEL_OK")
</pallas_src>

<mosaic_0001>
module attributes {stable_mosaic.version = 11 : i64} {
  func.func @_dropout_kernel(%arg0: i32, %arg1: memref<1xi32, #tpu.memory_space<smem>>, %arg2: memref<1x512xf32, #tpu.memory_space<vmem>>, %arg3: memref<1x512xf32, #tpu.memory_space<vmem>>) attributes {dimension_semantics = [#tpu.dimension_semantics<parallel>], iteration_bounds = array<i64: 1>, scalar_prefetch = 1 : i64, scratch_operands = 0 : i64, tpu.core_type = #tpu.core_type<tc>, window_params = [{transform_indices = @transform_0, window_bounds = array<i64: 1, 512>}, {transform_indices = @transform_1, window_bounds = array<i64: 1, 512>}]} {
    %c1_i32 = arith.constant 1 : i32
    %0 = arith.muli %arg0, %c1_i32 : i32
    %1 = tpu.iota {dimensions = array<i32: 0>} : vector<1x512xi32>
    %2 = vector.broadcast %0 : i32 to vector<1x512xi32>
    %3 = arith.addi %1, %2 : vector<1x512xi32>
    %4 = tpu.iota {dimensions = array<i32: 1>} : vector<1x512xi32>
    %c512_i32 = arith.constant 512 : i32
    %5 = vector.broadcast %c512_i32 : i32 to vector<1x512xi32>
    %6 = arith.muli %3, %5 : vector<1x512xi32>
    %7 = arith.addi %6, %4 : vector<1x512xi32>
    %c0 = arith.constant 0 : index
    %8 = memref.load %arg1[%c0] : memref<1xi32, #tpu.memory_space<smem>>
    %c-1640531527_i32 = arith.constant -1640531527 : i32
    %9 = arith.muli %8, %c-1640531527_i32 : i32
    %10 = vector.broadcast %9 : i32 to vector<1x512xi32>
    %11 = arith.xori %7, %10 : vector<1x512xi32>
    %c16_i32 = arith.constant 16 : i32
    %12 = vector.broadcast %c16_i32 : i32 to vector<1x512xi32>
    %13 = arith.shrui %11, %12 : vector<1x512xi32>
    %14 = arith.xori %11, %13 : vector<1x512xi32>
    %c2146121005_i32 = arith.constant 2146121005 : i32
    %15 = vector.broadcast %c2146121005_i32 : i32 to vector<1x512xi32>
    %16 = arith.muli %14, %15 : vector<1x512xi32>
    %c15_i32 = arith.constant 15 : i32
    %17 = vector.broadcast %c15_i32 : i32 to vector<1x512xi32>
    %18 = arith.shrui %16, %17 : vector<1x512xi32>
    %19 = arith.xori %16, %18 : vector<1x512xi32>
    %c-2073254261_i32 = arith.constant -2073254261 : i32
    %20 = vector.broadcast %c-2073254261_i32 : i32 to vector<1x512xi32>
    %21 = arith.muli %19, %20 : vector<1x512xi32>
    %c16_i32_0 = arith.constant 16 : i32
    %22 = vector.broadcast %c16_i32_0 : i32 to vector<1x512xi32>
    %23 = arith.shrui %21, %22 : vector<1x512xi32>
    %24 = arith.xori %21, %23 : vector<1x512xi32>
    %c-2147483648_i32 = arith.constant -2147483648 : i32
    %25 = vector.broadcast %c-2147483648_i32 : i32 to vector<1x512xi32>
    %26 = arith.cmpi ult, %24, %25 : vector<1x512xi32>
    %c0_1 = arith.constant 0 : index
    %c0_2 = arith.constant 0 : index
    %27 = vector.load %arg2[%c0_1, %c0_2] : memref<1x512xf32, #tpu.memory_space<vmem>>, vector<1x512xf32>
    %cst = arith.constant 2.000000e+00 : f32
    %28 = vector.broadcast %cst : f32 to vector<1x512xf32>
    %29 = arith.mulf %27, %28 : vector<1x512xf32>
    %cst_3 = arith.constant 0.000000e+00 : f32
    %30 = vector.broadcast %cst_3 : f32 to vector<1x512xf32>
    %31 = arith.select %26, %29, %30 : vector<1x512xi1>, vector<1x512xf32>
    %c0_4 = arith.constant 0 : index
    %c0_5 = arith.constant 0 : index
    %32 = vector.load %arg3[%c0_4, %c0_5] : memref<1x512xf32, #tpu.memory_space<vmem>>, vector<1x512xf32>
    tpu.vector_store %arg3[%c0_4, %c0_5], %31 {strides = array<i32>} : memref<1x512xf32, #tpu.memory_space<vmem>>, vector<1x512xf32>,
    return
  }
  func.func @transform_0(%arg0: i32, %arg1: memref<1xi32, #tpu.memory_space<smem>>) -> (i32, i32) {
    %c0_i32 = arith.constant 0 : i32
    %c0_i32_0 = arith.constant 0 : i32
    return %arg0, %c0_i32 : i32, i32
  }
  func.func @transform_1(%arg0: i32, %arg1: memref<1xi32, #tpu.memory_space<smem>>) -> (i32, i32) {
    %c0_i32 = arith.constant 0 : i32
    %c0_i32_0 = arith.constant 0 : i32
    return %arg0, %c0_i32 : i32, i32
  }
}

</mosaic_0001>

<llo_original>
// kernel: dropout_for_mc.1
$region0: #{dropout_for_mc.1}
  #allocation0 [shape = 'u32[]', space=smem, size = 0x4, offset = 0x4, fixed_abs, tag = 'smem constant byte address 0x4 - core index']
  #allocation1 [shape = 'u32[144,128]{1,0:T(1,128)}', space=vmem, size = 0x12000, scoped, tag = 'internal scratch']
  #allocation2 [shape = 's32[1]{0}', space=sflag, size = 0x4, scoped, tag = 'scoped memory for dropout_for_mc.1']
  #allocation3 [shape = 's32[1]{0:T(128)S(6)}', space=smem, size = 0x200, scoped, tag = 'prefetched SMEM operand 0']
  %s0 = inlined_call_operand.<no memory space> [shape: s32[1], index: 0, kind: input, shape index: {}]
  %s1 = inlined_call_operand.vmem [shape: f32[1,512], index: 1, kind: input, shape index: {}]
  %s2 = inlined_call_operand.vmem [shape: f32[1,512], index: 2, kind: output, shape index: {}]
  %s3 = sld [smem:[#allocation0]]
  $region14: #{dropout_for_mc.1} parent=0
    _
  %s5 = ssub.s32 1, %s3
  %s6 = scalar_select 0, %s5, %s3
  %7 = sst [smem:[#allocation3]] %s0
  // Predicated region
  $region2: #{dropout_for_mc.1} parent=0 // pred_check
    _
  $region3: #{dropout_for_mc.1} parent=0 // pred_check_branch
    %9 = sbr.rel (0) target = $region5
  $region4: #{dropout_for_mc.1} parent=0 // pred_region
    _
  $region5: #{dropout_for_mc.1} parent=0 // pred_fallthru
    _
  %v10 = vlaneseq
  %v11 = vshrl.u32 %v10, 7
  %v12 = vstv 0
  %v13 = vadd.s32 %v11, %v12
  %v14 = vlaneseq
  %v15 = vand.u32 %v14, 127
  %v16 = vadd.s32 %v15, 128
  %v17 = vadd.s32 %v15, 256
  %v18 = vadd.s32 %v15, 384
  %v19 = vmul.u32 %v13, 512
  %v20 = vadd.s32 %v19, %v15
  %v21 = vadd.s32 %v19, %v16
  %v22 = vadd.s32 %v19, %v17
  %v23 = vadd.s32 %v19, %v18
  %s24 = sld [smem:[#allocation3]]
  %s25 = smul.u32 %s24, 2654435769
  %v26 = vstv %s25
  %v27 = vxor.u32 %v20, %v26
  %v28 = vxor.u32 %v21, %v26
  %v29 = vxor.u32 %v22, %v26
  %v30 = vxor.u32 %v23, %v26
  %v31 = vshrl.u32 %v27, 16
  %v32 = vshrl.u32 %v28, 16
  %v33 = vshrl.u32 %v29, 16
  %v34 = vshrl.u32 %v30, 16
  %v35 = vxor.u32 %v27, %v31
  %v36 = vxor.u32 %v28, %v32
  %v37 = vxor.u32 %v29, %v33
  %v38 = vxor.u32 %v30, %v34
  %v39 = vmul.u32 %v35, 2146121005
  %v40 = vmul.u32 %v36, 2146121005
  %v41 = vmul.u32 %v37, 2146121005
  %v42 = vmul.u32 %v38, 2146121005
  %v43 = vshrl.u32 %v39, 15
  %v44 = vshrl.u32 %v40, 15
  %v45 = vshrl.u32 %v41, 15
  %v46 = vshrl.u32 %v42, 15
  %v47 = vxor.u32 %v39, %v43
  %v48 = vxor.u32 %v40, %v44
  %v49 = vxor.u32 %v41, %v45
  %v50 = vxor.u32 %v42, %v46
  %v51 = vmul.u32 %v47, 2221713035
  %v52 = vmul.u32 %v48, 2221713035
  %v53 = vmul.u32 %v49, 2221713035
  %v54 = vmul.u32 %v50, 2221713035
  %v55 = vshrl.u32 %v51, 16
  %v56 = vshrl.u32 %v52, 16
  %v57 = vshrl.u32 %v53, 16
  %v58 = vshrl.u32 %v54, 16
  %v59 = vxor.u32 %v51, %v55
  %v60 = vxor.u32 %v52, %v56
  %v61 = vxor.u32 %v53, %v57
  %v62 = vxor.u32 %v54, %v58
  %vm63 = vcmp.lt.u32.totalorder %v59, 2147483648
  %vm64 = vcmp.lt.u32.totalorder %v60, 2147483648
  %vm65 = vcmp.lt.u32.totalorder %v61, 2147483648
  %vm66 = vcmp.lt.u32.totalorder %v62, 2147483648
  %v67 = vld [vmem:[%s1] sm:$0xf]
  %v68 = vmul.f32 %v67, 2.0
  %v70 = vlaneseq
  %v71 = vshrl.u32 %v70, 7
  %v72 = vsub.s32 0, %v71
  %v73 = vrot.slane %v68, %v72
  %v74 = vlaneseq
  %v75 = vshrl.u32 %v74, 7
  %v76 = vsub.s32 1, %v75
  %v77 = vrot.slane %v68, %v76
  %v78 = vlaneseq
  %v79 = vshrl.u32 %v78, 7
  %v80 = vsub.s32 2, %v79
  %v81 = vrot.slane %v68, %v80
  %v82 = vlaneseq
  %v83 = vshrl.u32 %v82, 7
  %v84 = vsub.s32 3, %v83
  %v85 = vrot.slane %v68, %v84
  %v90 = vsel %vm63, %v73, 0.0
  %v91 = vsel %vm64, %v77, 0.0
  %v92 = vsel %vm65, %v81, 0.0
  %v93 = vsel %vm66, %v85, 0.0
  %v98 = vcombine.low %v90, %v91
  %v99 = vcombine.low %v92, %v93
  %v101 = vunpack.c.l.s4 1966171168
  %v102 = vunpack.c.0.s8 %v101
  %v103 = vlaneseq
  %v104 = vshrl.u32 %v103, 7
  %v105 = vsub.s32 %v102, %v104
  %v106 = vrot.slane %v98, %v105
  %v108 = vunpack.c.l.s4 1966171168
  %v109 = vunpack.c.0.s8 %v108
  %v110 = vlaneseq
  %v111 = vshrl.u32 %v110, 7
  %v112 = vsub.s32 %v109, %v111
  %v113 = vrot.slane %v99, %v112
  %v114 = vcombine.low %v106, %v113
  %v116 = vunpack.c.l.s4 1966171168
  %v117 = vunpack.c.0.s8 %v116
  %v118 = vlaneseq
  %v119 = vshrl.u32 %v118, 7
  %v120 = vsub.s32 %v117, %v119
  %v121 = vrot.slane %v114, %v120
  %v123 = vlaneseq
  %vm124 = vcmp.ge.s32.totalorder %v123, 0
  %vm125 = vcmp.lt.s32.totalorder %v123, 512
  %vm126 = vmand %vm124, %vm125
  %127 = vst.msk [vmem:[%s2] sm:$0xf] %vm126, %v121
  // Predicated region
  $region6: #{dropout_for_mc.1} parent=0 // pred_check
    _
  $region7: #{dropout_for_mc.1} parent=0 // pred_check_branch
    %129 = sbr.rel (0) target = $region9
  $region8: #{dropout_for_mc.1} parent=0 // pred_region
    _
  $region9: #{dropout_for_mc.1} parent=0 // pred_fallthru
    _
  // Predicated region
  $region10: #{dropout_for_mc.1} parent=0 // pred_check
    _
  $region11: #{dropout_for_mc.1} parent=0 // pred_check_branch
    %131 = sbr.rel (0) target = $region13
  $region12: #{dropout_for_mc.1} parent=0 // pred_region
    _
  $region13: #{dropout_for_mc.1} parent=0 // pred_fallthru
    _

</llo_original>
